<compile_context>
chip_gen: v7x
topology: tpu7x:2x2x1
jax: 0.10.0
libtpu: 0.0.40
codegen_flags: <defaults>
</compile_context>

<pallas_src>
import math
from functools import partial

import jax
import jax.numpy as jnp
from jax.experimental import pallas as pl
from jax.experimental.pallas import tpu as pltpu

PRIMITIVES = [
    "none",
    "max_pool_3x3",
    "avg_pool_3x3",
    "skip_connect",
    "sep_conv_3x3",
    "sep_conv_5x5",
    "dil_conv_3x3",
    "dil_conv_5x5",
]

BN_EPS = 1e-5
_VMEM_LIMIT = 32 * 1024 * 1024   # explicit scoped-VMEM budget (safe on v5e/v6e/v7x)


def _round_up(x, m):
    return ((x + m - 1) // m) * m


def _pick_tr(rows, cap):
    """Row-tile size: big tiles (multiple of 8); whole array when it is small."""
    return cap if rows >= cap else _round_up(rows, 8)


# ---------------------------------------------------------------------------
# Patch extraction (pure data-movement glue; stays in plain JAX)
# ---------------------------------------------------------------------------
def _extract_patches(x, kh, kw, stride, dilation, pad, pad_value=0.0, tap_major=False):
    # x: (N, H, W, C) -> patches (N, oh, ow, kh*kw, C)  [tap_major=False]
    #                 or         (kh*kw, N, oh, ow, C)  [tap_major=True]
    N, H, W, C = x.shape
    if pad > 0:
        x = jnp.pad(x, ((0, 0), (pad, pad), (pad, pad), (0, 0)),
                    constant_values=pad_value)
    eff_h = dilation * (kh - 1) + 1
    eff_w = dilation * (kw - 1) + 1
    oh = (H + 2 * pad - eff_h) // stride + 1
    ow = (W + 2 * pad - eff_w) // stride + 1
    cols = []
    for i in range(kh):
        for j in range(kw):
            di, dj = i * dilation, j * dilation
            sl = x[:, di:di + stride * (oh - 1) + 1:stride,
                      dj:dj + stride * (ow - 1) + 1:stride, :]
            cols.append(sl)
    patches = jnp.stack(cols, axis=0 if tap_major else 3)
    return patches, (N, oh, ow)


# ---------------------------------------------------------------------------
# Pallas kernels (each unique shape compiles once via jax.jit)
# ---------------------------------------------------------------------------
@partial(jax.jit, static_argnames=("stride", "padding", "dilation", "relu_in", "bn"))
def conv2d_pallas(x, w, *, stride=1, padding=0, dilation=1, relu_in=False, bn=True):
    """Conv (im2col + bf16 MXU matmul), fused input-ReLU and train-mode BatchNorm.

    BatchNorm statistics span all rows, so grid = (pass, row_tile): pass 0
    accumulates per-channel sum/sumsq into VMEM scratch (persists across grid
    steps), pass 1 recomputes the cheap matmul and writes normalized output.
    Zero-padded rows contribute 0 to both sums; mean/var divide by the true R.
    """
    Cout, Cin, KH, KW = w.shape
    patches, (N, oh, ow) = _extract_patches(x, KH, KW, stride, dilation, padding)
    Kdim = KH * KW * Cin
    R = N * oh * ow
    A = patches.reshape(R, Kdim)
    TR = _pick_tr(R, 512)
    Rp = _round_up(R, TR)
    if Rp != R:
        A = jnp.pad(A, ((0, Rp - R), (0, 0)))
    A = A.astype(jnp.bfloat16)                                   # bf16 MXU inputs
    B = jnp.transpose(w, (2, 3, 1, 0)).reshape(Kdim, Cout).astype(jnp.bfloat16)
    inv_r = 1.0 / R
    n_pass = 2 if bn else 1

    def kernel(a_ref, b_ref, o_ref, sum_ref, sq_ref):
        p = pl.program_id(0)
        i = pl.program_id(1)
        a = a_ref[...]
        if relu_in:
            a = jnp.maximum(a, 0.0)            # relu(0)=0 so zero-padding commutes
        y = jnp.dot(a, b_ref[...], preferred_element_type=jnp.float32)
        if bn:
            @pl.when(jnp.logical_and(p == 0, i == 0))
            def _():
                sum_ref[...] = jnp.zeros_like(sum_ref)
                sq_ref[...] = jnp.zeros_like(sq_ref)

            @pl.when(p == 0)
            def _():
                sum_ref[...] += jnp.sum(y, axis=0, keepdims=True)
                sq_ref[...] += jnp.sum(y * y, axis=0, keepdims=True)
                o_ref[...] = y                 # placeholder, overwritten in pass 1

            @pl.when(p == 1)
            def _():
                mean = sum_ref[...] * inv_r
                var = jnp.maximum(sq_ref[...] * inv_r - mean * mean, 0.0)
                o_ref[...] = (y - mean) * jax.lax.rsqrt(var + BN_EPS)
        else:
            o_ref[...] = y

    y = pl.pallas_call(
        kernel,
        out_shape=jax.ShapeDtypeStruct((Rp, Cout), jnp.float32),
        grid=(n_pass, Rp // TR),
        in_specs=[
            pl.BlockSpec((TR, Kdim), lambda p, i: (i, 0)),
            pl.BlockSpec((Kdim, Cout), lambda p, i: (0, 0)),
        ],
        out_specs=pl.BlockSpec((TR, Cout), lambda p, i: (i, 0)),
        scratch_shapes=[pltpu.VMEM((1, Cout), jnp.float32),
                        pltpu.VMEM((1, Cout), jnp.float32)],
        compiler_params=pltpu.CompilerParams(
            dimension_semantics=(("arbitrary", "arbitrary") if bn
                                 else ("arbitrary", "parallel")),
            vmem_limit_bytes=_VMEM_LIMIT),
    )(A, B)
    return y[:R].reshape(N, oh, ow, Cout)


@partial(jax.jit, static_argnames=("stride", "padding", "dilation", "relu_in"))
def depthwise_conv_pallas(x, w, *, stride, padding, dilation, relu_in):
    """Depthwise conv: tap-major layout, unrolled per-tap multiply-add (VPU only)."""
    C, _, K, _ = w.shape
    KK = K * K
    patches, (N, oh, ow) = _extract_patches(x, K, K, stride, dilation, padding,
                                            tap_major=True)
    R = N * oh * ow
    P = patches.reshape(KK, R, C)
    TR = _pick_tr(R, 256)
    Rp = _round_up(R, TR)
    if Rp != R:
        P = jnp.pad(P, ((0, 0), (0, Rp - R), (0, 0)))
    wk = jnp.transpose(w[:, 0], (1, 2, 0)).reshape(KK, C)        # (KK, C), tap-major

    def kernel(p_ref, w_ref, o_ref):
        def tap(k):
            t = p_ref[k]
            if relu_in:
                t = jnp.maximum(t, 0.0)
            return t * w_ref[k:k + 1, :]
        acc = tap(0)
        for k in range(1, KK):
            acc = acc + tap(k)
        o_ref[...] = acc

    out = pl.pallas_call(
        kernel,
        out_shape=jax.ShapeDtypeStruct((Rp, C), jnp.float32),
        grid=(Rp // TR,),
        in_specs=[
            pl.BlockSpec((KK, TR, C), lambda i: (0, i, 0)),
            pl.BlockSpec((KK, C), lambda i: (0, 0)),
        ],
        out_specs=pl.BlockSpec((TR, C), lambda i: (i, 0)),
        compiler_params=pltpu.CompilerParams(dimension_semantics=("parallel",),
                                             vmem_limit_bytes=_VMEM_LIMIT),
    )(P, wk)
    return out[:R].reshape(N, oh, ow, C)


@partial(jax.jit, static_argnames=("stride",))
def max_pool3_pallas(x, *, stride):
    N, H, W, C = x.shape
    patches, (_, oh, ow) = _extract_patches(x, 3, 3, stride, 1, 1,
                                            pad_value=-jnp.inf, tap_major=True)
    R = N * oh * ow
    P = patches.reshape(9, R, C)
    TR = _pick_tr(R, 512)
    Rp = _round_up(R, TR)
    if Rp != R:
        P = jnp.pad(P, ((0, 0), (0, Rp - R), (0, 0)))

    def kernel(p_ref, o_ref):
        m = p_ref[0]
        for k in range(1, 9):
            m = jnp.maximum(m, p_ref[k])
        o_ref[...] = m

    out = pl.pallas_call(
        kernel,
        out_shape=jax.ShapeDtypeStruct((Rp, C), jnp.float32),
        grid=(Rp // TR,),
        in_specs=[pl.BlockSpec((9, TR, C), lambda i: (0, i, 0))],
        out_specs=pl.BlockSpec((TR, C), lambda i: (i, 0)),
        compiler_params=pltpu.CompilerParams(dimension_semantics=("parallel",)),
    )(P)
    return out[:R].reshape(N, oh, ow, C)


@partial(jax.jit, static_argnames=("stride",))
def avg_pool3_pallas(x, *, stride):
    # AvgPool2d(3, stride, padding=1, count_include_pad=False)
    N, H, W, C = x.shape
    patches, (_, oh, ow) = _extract_patches(x, 3, 3, stride, 1, 1, 0.0, tap_major=True)
    mask, _ = _extract_patches(jnp.ones((N, H, W, 1), jnp.float32), 3, 3, stride, 1, 1,
                               0.0, tap_major=True)
    R = N * oh * ow
    P = patches.reshape(9, R, C)
    inv_cnt = 1.0 / jnp.sum(mask.reshape(9, R, 1), axis=0)       # exact, no in-kernel div
    TR = _pick_tr(R, 512)
    Rp = _round_up(R, TR)
    if Rp != R:
        P = jnp.pad(P, ((0, 0), (0, Rp - R), (0, 0)))
        inv_cnt = jnp.pad(inv_cnt, ((0, Rp - R), (0, 0)), constant_values=1.0)

    def kernel(p_ref, ic_ref, o_ref):
        s = p_ref[0]
        for k in range(1, 9):
            s = s + p_ref[k]
        o_ref[...] = s * ic_ref[...]

    out = pl.pallas_call(
        kernel,
        out_shape=jax.ShapeDtypeStruct((Rp, C), jnp.float32),
        grid=(Rp // TR,),
        in_specs=[
            pl.BlockSpec((9, TR, C), lambda i: (0, i, 0)),
            pl.BlockSpec((TR, 1), lambda i: (i, 0)),
        ],
        out_specs=pl.BlockSpec((TR, C), lambda i: (i, 0)),
        compiler_params=pltpu.CompilerParams(dimension_semantics=("parallel",)),
    )(P, inv_cnt)
    return out[:R].reshape(N, oh, ow, C)


@jax.jit
def factorized_reduce_pallas(x, w1, w2):
    """ReLU -> two 1x1 stride-2 convs (offset grids) -> concat -> BatchNorm, fused.

    Same 2-pass-grid BN scheme as conv2d_pallas; both halves are concatenated in
    registers so the output is written with a single full-width store.
    """
    N, H, W, C = x.shape
    assert H % 2 == 0 and W % 2 == 0, "FactorizedReduce expects even spatial dims"
    Co2 = w1.shape[0]
    Cout = 2 * Co2
    a1 = x[:, ::2, ::2, :].reshape(-1, C)
    a2 = x[:, 1::2, 1::2, :].reshape(-1, C)
    R = a1.shape[0]
    TR = _pick_tr(R, 512)
    Rp = _round_up(R, TR)
    if Rp != R:
        a1 = jnp.pad(a1, ((0, Rp - R), (0, 0)))
        a2 = jnp.pad(a2, ((0, Rp - R), (0, 0)))
    a1 = a1.astype(jnp.bfloat16)
    a2 = a2.astype(jnp.bfloat16)
    W1 = w1.reshape(Co2, C).T.astype(jnp.bfloat16)
    W2 = w2.reshape(Co2, C).T.astype(jnp.bfloat16)
    inv_r = 1.0 / R

    def kernel(a1_ref, a2_ref, w1_ref, w2_ref, o_ref, sum_ref, sq_ref):
        p = pl.program_id(0)
        i = pl.program_id(1)
        h1 = jnp.dot(jnp.maximum(a1_ref[...], 0.0), w1_ref[...],
                     preferred_element_type=jnp.float32)
        h2 = jnp.dot(jnp.maximum(a2_ref[...], 0.0), w2_ref[...],
                     preferred_element_type=jnp.float32)
        y = jnp.concatenate([h1, h2], axis=-1)

        @pl.when(jnp.logical_and(p == 0, i == 0))
        def _():
            sum_ref[...] = jnp.zeros_like(sum_ref)
            sq_ref[...] = jnp.zeros_like(sq_ref)

        @pl.when(p == 0)
        def _():
            sum_ref[...] += jnp.sum(y, axis=0, keepdims=True)
            sq_ref[...] += jnp.sum(y * y, axis=0, keepdims=True)
            o_ref[...] = y

        @pl.when(p == 1)
        def _():
            mean = sum_ref[...] * inv_r
            var = jnp.maximum(sq_ref[...] * inv_r - mean * mean, 0.0)
            o_ref[...] = (y - mean) * jax.lax.rsqrt(var + BN_EPS)

    y = pl.pallas_call(
        kernel,
        out_shape=jax.ShapeDtypeStruct((Rp, Cout), jnp.float32),
        grid=(2, Rp // TR),
        in_specs=[
            pl.BlockSpec((TR, C), lambda p, i: (i, 0)),
            pl.BlockSpec((TR, C), lambda p, i: (i, 0)),
            pl.BlockSpec((C, Co2), lambda p, i: (0, 0)),
            pl.BlockSpec((C, Co2), lambda p, i: (0, 0)),
        ],
        out_specs=pl.BlockSpec((TR, Cout), lambda p, i: (i, 0)),
        scratch_shapes=[pltpu.VMEM((1, Cout), jnp.float32),
                        pltpu.VMEM((1, Cout), jnp.float32)],
        compiler_params=pltpu.CompilerParams(
            dimension_semantics=("arbitrary", "arbitrary"),
            vmem_limit_bytes=_VMEM_LIMIT),
    )(a1, a2, W1, W2)
    return y[:R].reshape(N, H // 2, W // 2, Cout)


@jax.jit
def mixed_sum_pallas(op_outputs, weights):
    """MixedOp weighted sum: ops as separate inputs (no HBM stack), weights in SMEM."""
    O = len(op_outputs)
    N, H, W, C = op_outputs[0].shape
    R = N * H * W
    TR = _pick_tr(R, 512)
    Rp = _round_up(R, TR)
    flats = []
    for y in op_outputs:
        f = y.reshape(R, C)
        if Rp != R:
            f = jnp.pad(f, ((0, Rp - R), (0, 0)))
        flats.append(f)
    w_sm = weights.astype(jnp.float32)                           # (O,) scalars -> SMEM

    def kernel(*refs):
        w_ref = refs[0]
        in_refs = refs[1:1 + O]
        o_ref = refs[1 + O]
        acc = in_refs[0][...] * w_ref[0]
        for o in range(1, O):
            acc = acc + in_refs[o][...] * w_ref[o]
        o_ref[...] = acc

    out = pl.pallas_call(
        kernel,
        out_shape=jax.ShapeDtypeStruct((Rp, C), jnp.float32),
        grid=(Rp // TR,),
        in_specs=([pl.BlockSpec(memory_space=pltpu.MemorySpace.SMEM)]
                  + [pl.BlockSpec((TR, C), lambda i: (i, 0)) for _ in range(O)]),
        out_specs=pl.BlockSpec((TR, C), lambda i: (i, 0)),
        compiler_params=pltpu.CompilerParams(dimension_semantics=("parallel",)),
    )(w_sm, *flats)
    return out[:R].reshape(N, H, W, C)


@jax.jit
def head_pallas(x, w, b):
    """AdaptiveAvgPool2d(1) + Linear, fused in one (tiny) kernel."""
    N, H, W, C = x.shape
    x3 = x.reshape(N, H * W, C)
    b2 = b.reshape(1, -1)

    def kernel(x_ref, w_ref, b_ref, o_ref):
        pooled = jnp.mean(x_ref[...], axis=1)                    # (N, C)
        o_ref[...] = jnp.dot(pooled, w_ref[...],
                             preferred_element_type=jnp.float32) + b_ref[...]

    return pl.pallas_call(
        kernel,
        out_shape=jax.ShapeDtypeStruct((N, w.shape[1]), jnp.float32),
    )(x3, w, b2)


# ---------------------------------------------------------------------------
# DARTS operations built from the kernels
# ---------------------------------------------------------------------------
def _sep_conv(x, p, k, stride):
    pad = k // 2
    y = depthwise_conv_pallas(x, p["dw1"], stride=stride, padding=pad, dilation=1, relu_in=True)
    y = conv2d_pallas(y, p["pw1"], stride=1, padding=0, dilation=1, relu_in=False, bn=True)
    y = depthwise_conv_pallas(y, p["dw2"], stride=1, padding=pad, dilation=1, relu_in=True)
    y = conv2d_pallas(y, p["pw2"], stride=1, padding=0, dilation=1, relu_in=False, bn=True)
    return y


def _dil_conv(x, p, k, stride):
    pad = (k // 2) * 2   # 3x3 -> pad 2, 5x5 -> pad 4 (dilation 2)
    y = depthwise_conv_pallas(x, p["dw"], stride=stride, padding=pad, dilation=2, relu_in=True)
    y = conv2d_pallas(y, p["pw"], stride=1, padding=0, dilation=1, relu_in=False, bn=True)
    return y


def _op_forward(prim, x, p, stride):
    if prim == "none":   # kept for completeness; skipped by _mixed_op (w*0 == 0)
        y = x if stride == 1 else x[:, ::stride, ::stride, :]
        return jnp.zeros_like(y)
    if prim == "max_pool_3x3":
        return max_pool3_pallas(x, stride=stride)
    if prim == "avg_pool_3x3":
        return avg_pool3_pallas(x, stride=stride)
    if prim == "skip_connect":
        return x if stride == 1 else factorized_reduce_pallas(x, p["w1"], p["w2"])
    if prim == "sep_conv_3x3":
        return _sep_conv(x, p, 3, stride)
    if prim == "sep_conv_5x5":
        return _sep_conv(x, p, 5, stride)
    if prim == "dil_conv_3x3":
        return _dil_conv(x, p, 3, stride)
    if prim == "dil_conv_5x5":
        return _dil_conv(x, p, 5, stride)
    raise ValueError(prim)


_MIXED_PRIMS = [p for p in PRIMITIVES if p != "none"]
_MIXED_IDX = [k for k, p in enumerate(PRIMITIVES) if p != "none"]


def _mixed_op(x, edge_params, edge_weights, stride):
    # 'none' (Zero op) contributes exactly w * 0 == 0, so it is skipped entirely.
    outs = [_op_forward(prim, x, edge_params[prim], stride) for prim in _MIXED_PRIMS]
    w_used = jnp.take(edge_weights, jnp.asarray(_MIXED_IDX))
    return mixed_sum_pallas(outs, w_used)


def _cell_forward(cell, s0, s1, weights):
    if cell["pre0_type"] == "factorized_reduce":
        s0 = factorized_reduce_pallas(s0, cell["pre0"]["w1"], cell["pre0"]["w2"])
    else:
        s0 = conv2d_pallas(s0, cell["pre0"]["w"], stride=1, padding=0, dilation=1,
                           relu_in=True, bn=True)
    s1 = conv2d_pallas(s1, cell["pre1"]["w"], stride=1, padding=0, dilation=1,
                       relu_in=True, bn=True)
    states = [s0, s1]
    offset = 0
    for i in range(cell["steps"]):
        res = None
        for j in range(i + 2):
            stride = 2 if cell["reduction"] and j < 2 else 1
            out = _mixed_op(states[j], cell["ops"][offset + j], weights[offset + j], stride)
            res = out if res is None else res + out
        states.append(res)
        offset += i + 2
    return jnp.concatenate(states[-cell["multiplier"]:], axis=-1)


def network_forward(params, x_nchw):
    # layout: accept NCHW (PyTorch convention), convert to NHWC internally.
    x = jnp.transpose(x_nchw, (0, 2, 3, 1)).astype(jnp.float32)
    s0 = conv2d_pallas(x, params["stem_w"], stride=1, padding=1, dilation=1,
                       relu_in=False, bn=True)           # stem conv + BN
    s1 = s0
    w_normal = jax.nn.softmax(params["alphas_normal"], axis=-1)
    w_reduce = jax.nn.softmax(params["alphas_reduce"], axis=-1)
    for cell in params["cells"]:
        w = w_reduce if cell["reduction"] else w_normal
        s0, s1 = s1, _cell_forward(cell, s0, s1, w)
    return head_pallas(s1, params["classifier_w"], params["classifier_b"])


# ---------------------------------------------------------------------------
# Deterministic parameter initialization (mirrors Network.__init__ shapes)
# ---------------------------------------------------------------------------
class _KeyGen:
    def __init__(self, key):
        self._key = key

    def __call__(self):
        self._key, sub = jax.random.split(self._key)
        return sub


def _conv_w(kg, cout, cin, k):
    fan = cin * k * k
    return jax.random.normal(kg(), (cout, cin, k, k), jnp.float32) / math.sqrt(fan)


def _dw_w(kg, C, k):
    return jax.random.normal(kg(), (C, 1, k, k), jnp.float32) / math.sqrt(k * k)


def _init_op(kg, prim, C, stride):
    if prim in ("none", "max_pool_3x3", "avg_pool_3x3"):
        return {}
    if prim == "skip_connect":
        if stride == 1:
            return {}
        return {"w1": _conv_w(kg, C // 2, C, 1), "w2": _conv_w(kg, C // 2, C, 1)}
    k = 3 if "3x3" in prim else 5
    if prim.startswith("sep_conv"):
        return {"dw1": _dw_w(kg, C, k), "pw1": _conv_w(kg, C, C, 1),
                "dw2": _dw_w(kg, C, k), "pw2": _conv_w(kg, C, C, 1)}
    if prim.startswith("dil_conv"):
        return {"dw": _dw_w(kg, C, k), "pw": _conv_w(kg, C, C, 1)}
    raise ValueError(prim)


def _init_cell(kg, steps, multiplier, C_pp, C_p, C, reduction, reduction_prev):
    cell = {"reduction": reduction, "steps": steps, "multiplier": multiplier}
    if reduction_prev:
        cell["pre0_type"] = "factorized_reduce"
        cell["pre0"] = {"w1": _conv_w(kg, C // 2, C_pp, 1), "w2": _conv_w(kg, C // 2, C_pp, 1)}
    else:
        cell["pre0_type"] = "relu_conv_bn"
        cell["pre0"] = {"w": _conv_w(kg, C, C_pp, 1)}
    cell["pre1"] = {"w": _conv_w(kg, C, C_p, 1)}
    ops = []
    for i in range(steps):
        for j in range(i + 2):
            stride = 2 if reduction and j < 2 else 1
            ops.append({prim: _init_op(kg, prim, C, stride) for prim in PRIMITIVES})
    cell["ops"] = ops
    return cell


def init_network(key, C, num_classes, layers, steps=4, multiplier=4, stem_multiplier=3):
    kg = _KeyGen(key)
    params = {}
    C_cur = C * stem_multiplier
    params["stem_w"] = _conv_w(kg, C_cur, 2, 3)        # input_channels = 2
    C_pp, C_p, C_run = C_cur, C_cur, C
    reduction_prev = False
    red_layers = [layers // 3, 2 * layers // 3]
    cells = []
    for i in range(layers):
        if i in red_layers:
            C_curr, reduction = C_run * 2, True
        else:
            C_curr, reduction = C_run, False
        cells.append(_init_cell(kg, steps, multiplier, C_pp, C_p, C_curr,
                                reduction, reduction_prev))
        reduction_prev = reduction
        C_pp, C_p = C_p, C_curr * multiplier
        if reduction:
            C_run *= 2
    params["cells"] = cells
    params["classifier_w"] = jax.random.normal(kg(), (C_p, num_classes), jnp.float32) / math.sqrt(C_p)
    params["classifier_b"] = jnp.zeros((num_classes,), jnp.float32)
    k = sum(i + 2 for i in range(steps))
    params["alphas_normal"] = 0.001 * jax.random.normal(kg(), (k, len(PRIMITIVES)), jnp.float32)
    params["alphas_reduce"] = 0.001 * jax.random.normal(kg(), (k, len(PRIMITIVES)), jnp.float32)
    return params


if __name__ == "__main__":
    key = jax.random.PRNGKey(0)
    pkey, xkey = jax.random.split(key)

    # Small config consistent with the module: C=4, 3 layers (1 normal + 2 reduction
    # cells), steps=2, multiplier=2, stem_multiplier=3, 2 input channels, 8x8 images.
    C, num_classes, layers = 4, 10, 3
    steps, multiplier, stem_multiplier = 2, 2, 3

    params = init_network(pkey, C, num_classes, layers, steps=steps,
                          multiplier=multiplier, stem_multiplier=stem_multiplier)

    x = jax.random.normal(xkey, (2, 2, 8, 8), jnp.float32)   # NCHW like the PyTorch module

    logits = network_forward(params, x)
    logits = jax.block_until_ready(logits)

    assert logits.shape == (2, num_classes), logits.shape
    assert bool(jnp.all(jnp.isfinite(logits)))
    print("KERNEL_OK")
</pallas_src>

<mosaic_0001>
module attributes {stable_mosaic.version = 11 : i64} {
  func.func @kernel(%arg0: i32, %arg1: i32, %arg2: memref<128x18xbf16, #tpu.memory_space<vmem>>, %arg3: memref<18x12xbf16, #tpu.memory_space<vmem>>, %arg4: memref<128x12xf32, #tpu.memory_space<vmem>>, %arg5: memref<1x12xf32, #tpu.memory_space<vmem>>, %arg6: memref<1x12xf32, #tpu.memory_space<vmem>>) attributes {dimension_semantics = [#tpu.dimension_semantics<arbitrary>, #tpu.dimension_semantics<arbitrary>], iteration_bounds = array<i64: 2, 1>, scalar_prefetch = 0 : i64, scratch_operands = 2 : i64, tpu.core_type = #tpu.core_type<tc>, window_params = [{transform_indices = @transform_0, window_bounds = array<i64: 128, 18>}, {pipeline_mode = #tpu.pipeline_mode<synchronous>, transform_indices = @transform_1, window_bounds = array<i64: 18, 12>}, {transform_indices = @transform_2, window_bounds = array<i64: 128, 12>}]} {
    %c0 = arith.constant 0 : index
    %c0_0 = arith.constant 0 : index
    %0 = vector.load %arg2[%c0, %c0_0] : memref<128x18xbf16, #tpu.memory_space<vmem>>, vector<128x18xbf16>
    %c0_1 = arith.constant 0 : index
    %c0_2 = arith.constant 0 : index
    %1 = vector.load %arg3[%c0_1, %c0_2] : memref<18x12xbf16, #tpu.memory_space<vmem>>, vector<18x12xbf16>
    %cst = arith.constant dense<0.000000e+00> : vector<128x12xf32>
    %2 = tpu.matmul %0, %1, %cst {dimension_numbers = #tpu.dot_dimension_numbers<[1], [0], [0], [1], [0, 0, 1, 1], [], []>} : vector<128x18xbf16>, vector<18x12xbf16>, vector<128x12xf32> -> vector<128x12xf32>
    %c0_i32 = arith.constant 0 : i32
    %3 = arith.cmpi eq, %arg0, %c0_i32 : i32
    %c0_i32_3 = arith.constant 0 : i32
    %4 = arith.cmpi eq, %arg1, %c0_i32_3 : i32
    %5 = arith.andi %3, %4 : i1
    %6 = arith.extui %5 : i1 to i32
    %c0_i32_4 = arith.constant 0 : i32
    %7 = arith.cmpi ne, %6, %c0_i32_4 : i32
    scf.if %7 {
      %cst_8 = arith.constant 0.000000e+00 : f32
      %14 = vector.broadcast %cst_8 : f32 to vector<1x12xf32>
      %c0_9 = arith.constant 0 : index
      %c0_10 = arith.constant 0 : index
      %15 = vector.load %arg5[%c0_9, %c0_10] : memref<1x12xf32, #tpu.memory_space<vmem>>, vector<1x12xf32>
      tpu.vector_store %arg5[%c0_9, %c0_10], %14 {strides = array<i32>} : memref<1x12xf32, #tpu.memory_space<vmem>>, vector<1x12xf32>,
      %cst_11 = arith.constant 0.000000e+00 : f32
      %16 = vector.broadcast %cst_11 : f32 to vector<1x12xf32>
      %c0_12 = arith.constant 0 : index
      %c0_13 = arith.constant 0 : index
      %17 = vector.load %arg6[%c0_12, %c0_13] : memref<1x12xf32, #tpu.memory_space<vmem>>, vector<1x12xf32>
      tpu.vector_store %arg6[%c0_12, %c0_13], %16 {strides = array<i32>} : memref<1x12xf32, #tpu.memory_space<vmem>>, vector<1x12xf32>,
    } else {
    }
    %c0_i32_5 = arith.constant 0 : i32
    %8 = arith.cmpi eq, %arg0, %c0_i32_5 : i32
    %9 = arith.extui %8 : i1 to i32
    %c0_i32_6 = arith.constant 0 : i32
    %10 = arith.cmpi ne, %9, %c0_i32_6 : i32
    scf.if %10 {
      %c0_8 = arith.constant 0 : index
      %c0_9 = arith.constant 0 : index
      %14 = vector.load %arg5[%c0_8, %c0_9] : memref<1x12xf32, #tpu.memory_space<vmem>>, vector<1x12xf32>
      %cst_10 = arith.constant dense<0.000000e+00> : vector<12xf32>
      %15 = vector.multi_reduction <add>, %2, %cst_10 [0] : vector<128x12xf32> to vector<12xf32>
      %16 = vector.shape_cast %15 : vector<12xf32> to vector<1x12xf32>
      %17 = arith.addf %14, %16 : vector<1x12xf32>
      %c0_11 = arith.constant 0 : index
      %c0_12 = arith.constant 0 : index
      %18 = vector.load %arg5[%c0_11, %c0_12] : memref<1x12xf32, #tpu.memory_space<vmem>>, vector<1x12xf32>
      tpu.vector_store %arg5[%c0_11, %c0_12], %17 {strides = array<i32>} : memref<1x12xf32, #tpu.memory_space<vmem>>, vector<1x12xf32>,
      %c0_13 = arith.constant 0 : index
      %c0_14 = arith.constant 0 : index
      %19 = vector.load %arg6[%c0_13, %c0_14] : memref<1x12xf32, #tpu.memory_space<vmem>>, vector<1x12xf32>
      %20 = arith.mulf %2, %2 : vector<128x12xf32>
      %cst_15 = arith.constant dense<0.000000e+00> : vector<12xf32>
      %21 = vector.multi_reduction <add>, %20, %cst_15 [0] : vector<128x12xf32> to vector<12xf32>
      %22 = vector.shape_cast %21 : vector<12xf32> to vector<1x12xf32>
      %23 = arith.addf %19, %22 : vector<1x12xf32>
      %c0_16 = arith.constant 0 : index
      %c0_17 = arith.constant 0 : index
      %24 = vector.load %arg6[%c0_16, %c0_17] : memref<1x12xf32, #tpu.memory_space<vmem>>, vector<1x12xf32>
      tpu.vector_store %arg6[%c0_16, %c0_17], %23 {strides = array<i32>} : memref<1x12xf32, #tpu.memory_space<vmem>>, vector<1x12xf32>,
      %c0_18 = arith.constant 0 : index
      %c0_19 = arith.constant 0 : index
      %25 = vector.load %arg4[%c0_18, %c0_19] : memref<128x12xf32, #tpu.memory_space<vmem>>, vector<128x12xf32>
      tpu.vector_store %arg4[%c0_18, %c0_19], %2 {strides = array<i32>} : memref<128x12xf32, #tpu.memory_space<vmem>>, vector<128x12xf32>,
    } else {
    }
    %c1_i32 = arith.constant 1 : i32
    %11 = arith.cmpi eq, %arg0, %c1_i32 : i32
    %12 = arith.extui %11 : i1 to i32
    %c0_i32_7 = arith.constant 0 : i32
    %13 = arith.cmpi ne, %12, %c0_i32_7 : i32
    scf.if %13 {
      %c0_8 = arith.constant 0 : index
      %c0_9 = arith.constant 0 : index
      %14 = vector.load %arg5[%c0_8, %c0_9] : memref<1x12xf32, #tpu.memory_space<vmem>>, vector<1x12xf32>
      %cst_10 = arith.constant 7.812500e-03 : f32
      %15 = vector.broadcast %cst_10 : f32 to vector<1x12xf32>
      %16 = arith.mulf %14, %15 : vector<1x12xf32>
      %c0_11 = arith.constant 0 : index
      %c0_12 = arith.constant 0 : index
      %17 = vector.load %arg6[%c0_11, %c0_12] : memref<1x12xf32, #tpu.memory_space<vmem>>, vector<1x12xf32>
      %cst_13 = arith.constant 7.812500e-03 : f32
      %18 = vector.broadcast %cst_13 : f32 to vector<1x12xf32>
      %19 = arith.mulf %17, %18 : vector<1x12xf32>
      %20 = arith.mulf %16, %16 : vector<1x12xf32>
      %21 = arith.subf %19, %20 : vector<1x12xf32>
      %cst_14 = arith.constant 0.000000e+00 : f32
      %22 = vector.broadcast %cst_14 : f32 to vector<1x12xf32>
      %23 = arith.maximumf %21, %22 : vector<1x12xf32>
      %24 = vector.broadcast %16 : vector<1x12xf32> to vector<128x12xf32>
      %25 = arith.subf %2, %24 : vector<128x12xf32>
      %cst_15 = arith.constant 9.99999974E-6 : f32
      %26 = vector.broadcast %cst_15 : f32 to vector<1x12xf32>
      %27 = arith.addf %23, %26 : vector<1x12xf32>
      %28 = math.rsqrt %27 : vector<1x12xf32>
      %29 = vector.broadcast %28 : vector<1x12xf32> to vector<128x12xf32>
      %30 = arith.mulf %25, %29 : vector<128x12xf32>
      %c0_16 = arith.constant 0 : index
      %c0_17 = arith.constant 0 : index
      %31 = vector.load %arg4[%c0_16, %c0_17] : memref<128x12xf32, #tpu.memory_space<vmem>>, vector<128x12xf32>
      tpu.vector_store %arg4[%c0_16, %c0_17], %30 {strides = array<i32>} : memref<128x12xf32, #tpu.memory_space<vmem>>, vector<128x12xf32>,
    } else {
    }
    return
  }
  func.func @transform_0(%arg0: i32, %arg1: i32) -> (i32, i32) {
    %c0_i32 = arith.constant 0 : i32
    %c0_i32_0 = arith.constant 0 : i32
    return %arg1, %c0_i32 : i32, i32
  }
  func.func @transform_1(%arg0: i32, %arg1: i32) -> (i32, i32) {
    %c0_i32 = arith.constant 0 : i32
    %c0_i32_0 = arith.constant 0 : i32
    %c0_i32_1 = arith.constant 0 : i32
    return %c0_i32, %c0_i32_0 : i32, i32
  }
  func.func @transform_2(%arg0: i32, %arg1: i32) -> (i32, i32) {
    %c0_i32 = arith.constant 0 : i32
    %c0_i32_0 = arith.constant 0 : i32
    return %arg1, %c0_i32 : i32, i32
  }
}

</mosaic_0001>

<llo_original>
// kernel: conv2d_pallas.1
$region0: #{conv2d_pallas.1}
  #allocation0 [shape = 'u32[]', space=smem, size = 0x4, offset = 0x4, fixed_abs, tag = 'smem constant byte address 0x4 - core index']
  #allocation1 [shape = 'u32[144,128]{1,0:T(1,128)}', space=vmem, size = 0x12000, scoped, tag = 'internal scratch']
  #allocation2 [shape = 'f32[1,12]{1,0:T(1,128)}', space=vmem, size = 0x200, scoped, tag = 'scratch operand']
  #allocation3 [shape = 'f32[1,12]{1,0:T(1,128)}', space=vmem, size = 0x200, scoped, tag = 'scratch operand']
  %s0 = inlined_call_operand.vmem [shape: bf16[128,18], index: 0, kind: input, shape index: {}]
  %s1 = inlined_call_operand.vmem [shape: bf16[18,12], index: 1, kind: input, shape index: {}]
  %s2 = inlined_call_operand.hbm [shape: f32[128,12], index: 2, kind: output, shape index: {}]
  %s3 = sld [smem:[#allocation0]]
  $region53: #{conv2d_pallas.1} parent=0
    _
  %s5 = ssub.s32 1, %s3
  %s6 = scalar_select 0, %s5, %s3
  $region1: #{conv2d_pallas.1} parent=0
    #allocation4 [shape = 'u8[65536]{0}', space=vmem, size = 0x10000, scoped, tag = 'output window, operand 0, single buffered']
    #allocation5 [shape = 's32[2]{0}', space=sflag, size = 0x8, scoped, tag = 'scoped memory for conv2d_pallas.1']
    %7 = vsyncpa [#allocation5], 0
    loop: start=0, step=1, limit=4
    $region2: #{conv2d_pallas.1} parent=1 // loop_pre_header
      _
    $region3: #{conv2d_pallas.1} parent=1 // loop_header
      %s9 = sphi 0, %s13
      %p10 = scmp.ge.s32.totalorder %s9, 4
      %s16 = sphi 0, %s28
      %s17 = sphi 0, %s24
      %s18 = sphi 0, %s16
      %s19 = sphi 0, %s17
      %s20 = sphi 0, %s18
      %s21 = sphi 0, %s19
      %s31 = sphi 0, %s33
      %s34 = sphi 0, %s31
      %s35 = sphi 0, %s34
      %s51 = sphi 0, %s35
      %s55 = sphi 0, %s55
      %s57 = sphi 0, %s55
      %s58 = sphi 0, %s57
      %s72 = sphi 0, %s58
      %s78 = sphi 0, %s80
      %s81 = sphi 0, %s78
      %s82 = sphi 0, %s81
      %s98 = sphi 0, %s82
    $region4: #{conv2d_pallas.1} parent=1 // loop_header_branch
      %12 = sbr.rel (%p10) target = $region8
    $region5: #{conv2d_pallas.1} parent=1 // loop_body
      %s14 = ssub.s32 %s9, 1
      %s15 = ssub.s32 %s9, 2
      %s22 = sadd.s32 1, %s17
      %p23 = scmp.ge.s32.totalorder %s22, 1
      %s24 = scalar_select %p23, 0, %s22
      %s25 = sadd.s32 1, %s16
      %s26 = scalar_select %p23, %s25, %s16
      %p27 = scmp.ge.s32.totalorder %s26, 2
      %s28 = scalar_select %p27, 0, %s26
      %s29 = ssub.s32 %s17, %s24
      %p30 = scmp.eq.s32.totalorder %s29, 0
      %s32 = sadd.s32 %s31, 1
      %s33 = scalar_select %p30, %s31, %s32
      %p36 = pneg %p30
      %p37 = scmp.eq.s32.totalorder %s9, 1
      %p38 = por %p36, %p37
      %p39 = scmp.ne.s32.totalorder %s31, %s34
      %p40 = scmp.eq.s32.totalorder %s9, 0
      %p41 = por %p39, %p40
      %p42 = scmp.ne.s32.totalorder %s31, %s34
      %p43 = scmp.eq.s32.totalorder %s14, 1
      %p44 = por %p42, %p43
      %p45 = scmp.ne.s32.totalorder %s34, %s35
      %p46 = scmp.eq.s32.totalorder %s14, 0
      %p47 = por %p45, %p46
      %p48 = scmp.ne.s32.totalorder %s34, %s35
      %p49 = scmp.eq.s32.totalorder %s15, 1
      %p50 = por %p48, %p49
      %p52 = scmp.ne.s32.totalorder %s35, %s51
      %p53 = scmp.eq.s32.totalorder %s15, 0
      %p54 = por %p52, %p53
      %s56 = sadd.s32 %s55, 1
      %p59 = scmp.eq.s32.totalorder %s9, 1
      %p60 = scmp.ne.s32.totalorder %s55, %s57
      %p61 = scmp.eq.s32.totalorder %s9, 0
      %p62 = por %p60, %p61
      %p63 = scmp.ne.s32.totalorder %s55, %s57
      %p64 = scmp.eq.s32.totalorder %s14, 1
      %p65 = por %p63, %p64
      %p66 = scmp.ne.s32.totalorder %s57, %s58
      %p67 = scmp.eq.s32.totalorder %s14, 0
      %p68 = por %p66, %p67
      %p69 = scmp.ne.s32.totalorder %s57, %s58
      %p70 = scmp.eq.s32.totalorder %s15, 1
      %p71 = por %p69, %p70
      %p73 = scmp.ne.s32.totalorder %s58, %s72
      %p74 = scmp.eq.s32.totalorder %s15, 0
      %p75 = por %p73, %p74
      %s76 = ssub.s32 %s17, %s24
      %p77 = scmp.eq.s32.totalorder %s76, 0
      %s79 = sadd.s32 %s78, 1
      %s80 = scalar_select %p77, %s78, %s79
      %p83 = pneg %p77
      %p84 = scmp.eq.s32.totalorder %s9, 1
      %p85 = por %p83, %p84
      %p86 = scmp.ne.s32.totalorder %s78, %s81
      %p87 = scmp.eq.s32.totalorder %s9, 0
      %p88 = por %p86, %p87
      %p89 = scmp.ne.s32.totalorder %s78, %s81
      %p90 = scmp.eq.s32.totalorder %s14, 1
      %p91 = por %p89, %p90
      %p92 = scmp.ne.s32.totalorder %s81, %s82
      %p93 = scmp.eq.s32.totalorder %s14, 0
      %p94 = por %p92, %p93
      %p95 = scmp.ne.s32.totalorder %s81, %s82
      %p96 = scmp.eq.s32.totalorder %s15, 1
      %p97 = por %p95, %p96
      %p99 = scmp.ne.s32.totalorder %s82, %s98
      %p100 = scmp.eq.s32.totalorder %s15, 0
      %p101 = por %p99, %p100
      %p102 = scmp.le.s32.totalorder 1, %s9
      %p103 = scmp.lt.s32.totalorder %s9, 3
      %p104 = pnand %p102, %p103
      %p105 = pneg %p104
      // Predicated region
      $region9: #{conv2d_pallas.1} parent=5 // pred_check
        _
      $region10: #{conv2d_pallas.1} parent=5 // pred_check_branch
        %107 = sbr.rel (%p104) target = $region12
      $region11: #{conv2d_pallas.1} parent=5 // pred_region
        %s108 = ssub.s32 %s9, 1
        // Predicated region
        $region13: #{conv2d_pallas.1} parent=11 // pred_check
          %p109 = pneg %p47
        $region14: #{conv2d_pallas.1} parent=11 // pred_check_branch
          %111 = sbr.rel (%p109) target = $region16
        $region15: #{conv2d_pallas.1} parent=11 // pred_region
          %s112 = smul.u32 16, %s19
          %p113 = scmp.lt.s32.totalorder %s112, 15
          %s114 = scalar_select %p113, %s112, 15
          %s115 = smul.addr %s114, 4
          %s116 = scalar_lea.vmem %s0, %s115
          %s117 = smul.u32 16, %s19
        $region16: #{conv2d_pallas.1} parent=11 // pred_fallthru
          _
        // Predicated region
        $region17: #{conv2d_pallas.1} parent=11 // pred_check
          %p118 = pneg %p68
        $region18: #{conv2d_pallas.1} parent=11 // pred_check_branch
          %120 = sbr.rel (%p118) target = $region20
        $region19: #{conv2d_pallas.1} parent=11 // pred_region
          _
        $region20: #{conv2d_pallas.1} parent=11 // pred_fallthru
          _
      $region12: #{conv2d_pallas.1} parent=5 // pred_fallthru
        _
      %p121 = scmp.lt.s32.totalorder %s9, 2
      // Predicated region
      $region21: #{conv2d_pallas.1} parent=5 // pred_check
        %p122 = pneg %p121
      $region22: #{conv2d_pallas.1} parent=5 // pred_check_branch
        %124 = sbr.rel (%p122) target = $region24
      $region23: #{conv2d_pallas.1} parent=5 // pred_region
        _
      $region24: #{conv2d_pallas.1} parent=5 // pred_fallthru
        _
      %p125 = scmp.le.s32.totalorder 1, %s9
      %p126 = scmp.lt.s32.totalorder %s9, 3
      %p127 = pnand %p125, %p126
      %p128 = pneg %p127
      // Predicated region
      $region25: #{conv2d_pallas.1} parent=5 // pred_check
        _
      $region26: #{conv2d_pallas.1} parent=5 // pred_check_branch
        %130 = sbr.rel (%p127) target = $region28
      $region27: #{conv2d_pallas.1} parent=5 // pred_region
        %s131 = ssub.s32 %s9, 1
        %s132 = smul.u32 16, %s19
        %p133 = scmp.lt.s32.totalorder %s132, 15
        %s134 = scalar_select %p133, %s132, 15
        %s135 = smul.addr %s134, 4
        %s136 = scalar_lea.vmem %s0, %s135
        %p137 = pneg %p47
        %p138 = pneg %p44
        %p139 = pneg %p68
        %p140 = pneg %p65
        %p141 = pneg %p94
        %p142 = pneg %p91
        %s143 = smul.u32 16, %s19
        %p144 = scmp.lt.s32.totalorder %s143, 15
        %s145 = scalar_select %p144, %s143, 15
        %s146 = smul.addr %s145, 4
        %s147 = scalar_lea.vmem %s0, %s146
        %s148 = smul.u32 16, %s19
        %s149 = smul.u32 16, %s19
        %v151 = vld [vmem:[%s147] sm:$0xf]
        %v152 = vld [vmem:[%s147 + $0x4] sm:$0xf]
        %v153 = vld [vmem:[%s147 + $0x8] sm:$0xf]
        %v154 = vld [vmem:[%s147 + $0xc] sm:$0xf]
        %v155 = vld [vmem:[%s147 + $0x10] sm:$0xf]
        %v156 = vld [vmem:[%s147 + $0x14] sm:$0xf]
        %v157 = vld [vmem:[%s147 + $0x18] sm:$0xf]
        %v158 = vld [vmem:[%s147 + $0x1c] sm:$0xf]
        %v159 = vld [vmem:[%s147 + $0x20] sm:$0xf]
        %v160 = vld [vmem:[%s147 + $0x24] sm:$0xf]
        %v161 = vld [vmem:[%s147 + $0x28] sm:$0xf]
        %v162 = vld [vmem:[%s147 + $0x2c] sm:$0xf]
        %v163 = vld [vmem:[%s147 + $0x30] sm:$0xf]
        %v164 = vld [vmem:[%s147 + $0x34] sm:$0xf]
        %v165 = vld [vmem:[%s147 + $0x38] sm:$0xf]
        %v166 = vld [vmem:[%s147 + $0x3c] sm:$0xf]
        %v167 = vld [vmem:[%s1] sm:$0xf]
        %v168 = vld [vmem:[%s1 + $0x4] sm:$0xf]
        %v169 = vld [vmem:[%s1 + $0x8] sm:$0x1]
        %v186 = vunpack.c.l.b16 %v151
        %v187 = vunpack.c.l.b16 %v152
        %v188 = vunpack.c.l.b16 %v153
        %v189 = vunpack.c.l.b16 %v154
        %v190 = vunpack.c.l.b16 %v155
        %v191 = vunpack.c.l.b16 %v156
        %v192 = vunpack.c.l.b16 %v157
        %v193 = vunpack.c.l.b16 %v158
        %v194 = vunpack.c.l.b16 %v159
        %v195 = vunpack.c.l.b16 %v160
        %v196 = vunpack.c.l.b16 %v161
        %v197 = vunpack.c.l.b16 %v162
        %v198 = vunpack.c.l.b16 %v163
        %v199 = vunpack.c.l.b16 %v164
        %v200 = vunpack.c.l.b16 %v165
        %v201 = vunpack.c.l.b16 %v166
        %v202 = vpack.c.b16 %v187, %v186
        %v203 = vpack.c.b16 %v189, %v188
        %v204 = vpack.c.b16 %v191, %v190
        %v205 = vpack.c.b16 %v193, %v192
        %v206 = vpack.c.b16 %v195, %v194
        %v207 = vpack.c.b16 %v197, %v196
        %v208 = vpack.c.b16 %v199, %v198
        %v209 = vpack.c.b16 %v201, %v200
        %v213 = vunpack.c.l.b16 %v167
        %v214 = vunpack.c.l.b16 %v168
        %v215 = vunpack.c.l.b16 %v169
        %v216 = vpack.c.b16 %v214, %v213
        %v217 = vpack.c.b16 %v215, %v215
        %vm219 = vcmask 146432
        %v221 = vsel %vm219, %v202, 0
        %v224 = vsel %vm219, %v203, 0
        %v227 = vsel %vm219, %v204, 0
        %v230 = vsel %vm219, %v205, 0
        %v233 = vsel %vm219, %v206, 0
        %v236 = vsel %vm219, %v207, 0
        %v239 = vsel %vm219, %v208, 0
        %v242 = vsel %vm219, %v209, 0
        %vm244 = vcmask 1040384
        %v246 = vsel %vm244, %v217, 0
        %248 = vmatprep.subr.bf16.mxu0 0
        %249 = vmatpush1.bf16.msra.mxu0 %v216
        %250 = vmatprep.subr.bf16.mxu0 0
        %251 = vmatpush1.bf16.msra.mxu0 %v246
        %252 = vmatprep.subr.bf16.mxu0 0
        %253 = vmatpush1.bf16.msra.mxu0 0
        %254 = vmatprep.subr.bf16.mxu0 0
        %255 = vmatpush1.bf16.msra.mxu0 0
        %256 = vmatprep.subr.bf16.mxu0 0
        %257 = vmatpush1.bf16.msra.mxu0 0
        %258 = vmatprep.subr.bf16.mxu0 0
        %259 = vmatpush1.bf16.msra.mxu0 0
        %260 = vmatprep.subr.bf16.mxu0 0
        %261 = vmatpush1.bf16.msra.mxu0 0
        %262 = vmatprep.subr.bf16.mxu0 0
        %263 = vmatpush1.bf16.msra.mxu0 0
        %264 = vmatprep.subr.bf16.mxu0 0
        %265 = vmatpush1.bf16.msra.mxu0 0
        %266 = vmatprep.subr.bf16.mxu0 0
        %267 = vmatpush1.bf16.msra.mxu0 0
        %268 = vmatprep.subr.bf16.mxu0 0
        %269 = vmatpush1.bf16.msra.mxu0 0
        %270 = vmatprep.subr.bf16.mxu0 0
        %271 = vmatpush1.bf16.msra.mxu0 0
        %272 = vmatprep.subr.bf16.mxu0 0
        %273 = vmatpush1.bf16.msra.mxu0 0
        %274 = vmatprep.subr.bf16.mxu0 0
        %275 = vmatpush1.bf16.msra.mxu0 0
        %276 = vmatprep.subr.bf16.mxu0 0
        %277 = vmatpush1.bf16.msra.mxu0 0
        %278 = vmatprep.subr.bf16.mxu0 0
        %279 = vmatpush1.bf16.msra.mxu0 0
        %280 = vmatprep.mubr.bf16.mxu0 0
        %281 = vmatmul.mubr.bf16.gmra.mrb[0].mxu0 %v221
        %v282 = vpop.f32.mrb[0].mxu0
        %v283 = vadd.f32 0.0, %v282
        %v284 = vpop.f32.mrb[0].mxu0
        %v285 = vpop.f32.mrb[0].mxu0
        %v286 = vadd.f32 0.0, %v285
        %v287 = vpop.f32.mrb[0].mxu0
        %288 = vmatprep.mubr.bf16.mxu0 0
        %289 = vmatmul.mubr.bf16.gmra.mrb[0].mxu0 %v224
        %v290 = vpop.f32.mrb[0].mxu0
        %v291 = vadd.f32 0.0, %v290
        %v292 = vpop.f32.mrb[0].mxu0
        %v293 = vpop.f32.mrb[0].mxu0
        %v294 = vadd.f32 0.0, %v293
        %v295 = vpop.f32.mrb[0].mxu0
        %296 = vmatprep.mubr.bf16.mxu0 0
        %297 = vmatmul.mubr.bf16.gmra.mrb[0].mxu0 %v227
        %v298 = vpop.f32.mrb[0].mxu0
        %v299 = vadd.f32 0.0, %v298
        %v300 = vpop.f32.mrb[0].mxu0
        %v301 = vpop.f32.mrb[0].mxu0
        %v302 = vadd.f32 0.0, %v301
        %v303 = vpop.f32.mrb[0].mxu0
        %304 = vmatprep.mubr.bf16.mxu0 0
        %305 = vmatmul.mubr.bf16.gmra.mrb[0].mxu0 %v230
        %v306 = vpop.f32.mrb[0].mxu0
        %v307 = vadd.f32 0.0, %v306
        %v308 = vpop.f32.mrb[0].mxu0
        %v309 = vpop.f32.mrb[0].mxu0
        %v310 = vadd.f32 0.0, %v309
        %v311 = vpop.f32.mrb[0].mxu0
        %312 = vmatprep.mubr.bf16.mxu0 0
        %313 = vmatmul.mubr.bf16.gmra.mrb[0].mxu0 %v233
        %v314 = vpop.f32.mrb[0].mxu0
        %v315 = vadd.f32 0.0, %v314
        %v316 = vpop.f32.mrb[0].mxu0
        %v317 = vpop.f32.mrb[0].mxu0
        %v318 = vadd.f32 0.0, %v317
        %v319 = vpop.f32.mrb[0].mxu0
        %320 = vmatprep.mubr.bf16.mxu0 0
        %321 = vmatmul.mubr.bf16.gmra.mrb[0].mxu0 %v236
        %v322 = vpop.f32.mrb[0].mxu0
        %v323 = vadd.f32 0.0, %v322
        %v324 = vpop.f32.mrb[0].mxu0
        %v325 = vpop.f32.mrb[0].mxu0
        %v326 = vadd.f32 0.0, %v325
        %v327 = vpop.f32.mrb[0].mxu0
        %328 = vmatprep.mubr.bf16.mxu0 0
        %329 = vmatmul.mubr.bf16.gmra.mrb[0].mxu0 %v239
        %v330 = vpop.f32.mrb[0].mxu0
        %v331 = vadd.f32 0.0, %v330
        %v332 = vpop.f32.mrb[0].mxu0
        %v333 = vpop.f32.mrb[0].mxu0
        %v334 = vadd.f32 0.0, %v333
        %v335 = vpop.f32.mrb[0].mxu0
        %336 = vmatprep.mubr.bf16.mxu0 0
        %337 = vmatmul.mubr.bf16.gmra.mrb[0].mxu0 %v242
        %v338 = vpop.f32.mrb[0].mxu0
        %v339 = vadd.f32 0.0, %v338
        %v340 = vpop.f32.mrb[0].mxu0
        %v341 = vpop.f32.mrb[0].mxu0
        %v342 = vadd.f32 0.0, %v341
        %v343 = vpop.f32.mrb[0].mxu0
        %344 = vdwg.mxu0
        %p345 = scmp.eq.s32.totalorder %s18, 0
        %p346 = scmp.eq.s32.totalorder %s19, 0
        %p347 = pnand %p345, %p346
        %p348 = pneg %p347
        // Predicated region
        $region29: #{conv2d_pallas.1} parent=27 // pred_check
          _
        $region30: #{conv2d_pallas.1} parent=27 // pred_check_branch
          %350 = sbr.rel (%p347) target = $region32
        $region31: #{conv2d_pallas.1} parent=27 // pred_region
          %vm351 = vcmask 90112
          %352 = vst.msk [vmem:[#allocation2] sm:$0x1] %vm351, 0.0
          %353 = vst.msk [vmem:[#allocation3] sm:$0x1] %vm351, 0.0
        $region32: #{conv2d_pallas.1} parent=27 // pred_fallthru
          _
        // Predicated region
        $region33: #{conv2d_pallas.1} parent=27 // pred_check
          %p354 = pneg %p345
        $region34: #{conv2d_pallas.1} parent=27 // pred_check_branch
          %356 = sbr.rel (%p354) target = $region36
        $region35: #{conv2d_pallas.1} parent=27 // pred_region
          %v357 = vld [vmem:[#allocation2] sm:$0x1]
          %vm358 = vcmask 97280
          %v359 = vsel %vm358, %v283, 0.0
          %v360 = vsel %vm358, %v286, 0.0
          %v361 = vadd.f32 %v359, %v360
          %v362 = vsel %vm358, %v291, 0.0
          %v363 = vadd.f32 %v361, %v362
          %v364 = vsel %vm358, %v294, 0.0
          %v365 = vadd.f32 %v363, %v364
          %v366 = vsel %vm358, %v299, 0.0
          %v367 = vadd.f32 %v365, %v366
          %v368 = vsel %vm358, %v302, 0.0
          %v369 = vadd.f32 %v367, %v368
          %v370 = vsel %vm358, %v307, 0.0
          %v371 = vadd.f32 %v369, %v370
          %v372 = vsel %vm358, %v310, 0.0
          %v373 = vadd.f32 %v371, %v372
          %v374 = vsel %vm358, %v315, 0.0
          %v375 = vadd.f32 %v373, %v374
          %v376 = vsel %vm358, %v318, 0.0
          %v377 = vadd.f32 %v375, %v376
          %v378 = vsel %vm358, %v323, 0.0
          %v379 = vadd.f32 %v377, %v378
          %v380 = vsel %vm358, %v326, 0.0
          %v381 = vadd.f32 %v379, %v380
          %v382 = vsel %vm358, %v331, 0.0
          %v383 = vadd.f32 %v381, %v382
          %v384 = vsel %vm358, %v334, 0.0
          %v385 = vadd.f32 %v383, %v384
          %v386 = vsel %vm358, %v339, 0.0
          %v387 = vadd.f32 %v385, %v386
          %v388 = vsel %vm358, %v342, 0.0
          %v389 = vadd.f32 %v387, %v388
          %v390 = vrot.slane %v389, 4
          %v391 = vadd.f32 %v389, %v390
          %v392 = vrot.slane %v391, 2
          %v393 = vadd.f32 %v391, %v392
          %v394 = vrot.slane %v393, 1
          %v395 = vadd.f32 %v393, %v394
          %v396 = vadd.f32 %v357, %v395
          %vm397 = vcmask 90112
          %398 = vst.msk [vmem:[#allocation2] sm:$0x1] %vm397, %v396
          %v399 = vld [vmem:[#allocation3] sm:$0x1]
          %v400 = vmul.f32 %v283, %v283
          %v401 = vmul.f32 %v286, %v286
          %v402 = vmul.f32 %v291, %v291
          %v403 = vmul.f32 %v294, %v294
          %v404 = vmul.f32 %v299, %v299
          %v405 = vmul.f32 %v302, %v302
          %v406 = vmul.f32 %v307, %v307
          %v407 = vmul.f32 %v310, %v310
          %v408 = vmul.f32 %v315, %v315
          %v409 = vmul.f32 %v318, %v318
          %v410 = vmul.f32 %v323, %v323
          %v411 = vmul.f32 %v326, %v326
          %v412 = vmul.f32 %v331, %v331
          %v413 = vmul.f32 %v334, %v334
          %v414 = vmul.f32 %v339, %v339
          %v415 = vmul.f32 %v342, %v342
          %v416 = vsel %vm358, %v400, 0.0
          %v417 = vsel %vm358, %v401, 0.0
          %v418 = vadd.f32 %v416, %v417
          %v419 = vsel %vm358, %v402, 0.0
          %v420 = vadd.f32 %v418, %v419
          %v421 = vsel %vm358, %v403, 0.0
          %v422 = vadd.f32 %v420, %v421
          %v423 = vsel %vm358, %v404, 0.0
          %v424 = vadd.f32 %v422, %v423
          %v425 = vsel %vm358, %v405, 0.0
          %v426 = vadd.f32 %v424, %v425
          %v427 = vsel %vm358, %v406, 0.0
          %v428 = vadd.f32 %v426, %v427
          %v429 = vsel %vm358, %v407, 0.0
          %v430 = vadd.f32 %v428, %v429
          %v431 = vsel %vm358, %v408, 0.0
          %v432 = vadd.f32 %v430, %v431
          %v433 = vsel %vm358, %v409, 0.0
          %v434 = vadd.f32 %v432, %v433
          %v435 = vsel %vm358, %v410, 0.0
          %v436 = vadd.f32 %v434, %v435
          %v437 = vsel %vm358, %v411, 0.0
          %v438 = vadd.f32 %v436, %v437
          %v439 = vsel %vm358, %v412, 0.0
          %v440 = vadd.f32 %v438, %v439
          %v441 = vsel %vm358, %v413, 0.0
          %v442 = vadd.f32 %v440, %v441
          %v443 = vsel %vm358, %v414, 0.0
          %v444 = vadd.f32 %v442, %v443
          %v445 = vsel %vm358, %v415, 0.0
          %v446 = vadd.f32 %v444, %v445
          %v447 = vrot.slane %v446, 4
          %v448 = vadd.f32 %v446, %v447
          %v449 = vrot.slane %v448, 2
          %v450 = vadd.f32 %v448, %v449
          %v451 = vrot.slane %v450, 1
          %v452 = vadd.f32 %v450, %v451
          %v453 = vadd.f32 %v399, %v452
          %454 = vst.msk [vmem:[#allocation3] sm:$0x1] %vm397, %v453
          %455 = vst.msk [vmem:[#allocation4] sm:$0xff] %vm358, %v283
          %456 = vst.msk [vmem:[#allocation4 + $0x8] sm:$0xff] %vm358, %v286
          %457 = vst.msk [vmem:[#allocation4 + $0x10] sm:$0xff] %vm358, %v291
          %458 = vst.msk [vmem:[#allocation4 + $0x18] sm:$0xff] %vm358, %v294
          %459 = vst.msk [vmem:[#allocation4 + $0x20] sm:$0xff] %vm358, %v299
          %460 = vst.msk [vmem:[#allocation4 + $0x28] sm:$0xff] %vm358, %v302
          %461 = vst.msk [vmem:[#allocation4 + $0x30] sm:$0xff] %vm358, %v307
          %462 = vst.msk [vmem:[#allocation4 + $0x38] sm:$0xff] %vm358, %v310
          %463 = vst.msk [vmem:[#allocation4 + $0x40] sm:$0xff] %vm358, %v315
          %464 = vst.msk [vmem:[#allocation4 + $0x48] sm:$0xff] %vm358, %v318
          %465 = vst.msk [vmem:[#allocation4 + $0x50] sm:$0xff] %vm358, %v323
          %466 = vst.msk [vmem:[#allocation4 + $0x58] sm:$0xff] %vm358, %v326
          %467 = vst.msk [vmem:[#allocation4 + $0x60] sm:$0xff] %vm358, %v331
          %468 = vst.msk [vmem:[#allocation4 + $0x68] sm:$0xff] %vm358, %v334
          %469 = vst.msk [vmem:[#allocation4 + $0x70] sm:$0xff] %vm358, %v339
          %470 = vst.msk [vmem:[#allocation4 + $0x78] sm:$0xff] %vm358, %v342
        $region36: #{conv2d_pallas.1} parent=27 // pred_fallthru
          _
        %p471 = scmp.eq.s32.totalorder %s18, 1
        // Predicated region
        $region37: #{conv2d_pallas.1} parent=27 // pred_check
          %p472 = pneg %p471
        $region38: #{conv2d_pallas.1} parent=27 // pred_check_branch
          %474 = sbr.rel (%p472) target = $region40
        $region39: #{conv2d_pallas.1} parent=27 // pred_region
          %v475 = vld [vmem:[#allocation2] sm:$0x1]
          %v476 = vmul.f32 %v475, 0.0078125
          %v477 = vld [vmem:[#allocation3] sm:$0x1]
          %v478 = vmul.f32 %v477, 0.0078125
          %v479 = vmul.f32 %v476, %v476
          %v480 = vsub.f32 %v478, %v479
          %v481 = vmax.f32 %v480, 0.0
          %v483 = vlaneseq
          %v484 = vshrl.u32 %v483, 7
          %v485 = vsub.s32 0, %v484
          %v486 = vrot.slane %v476, %v485
          %v488 = vsub.f32 %v283, %v486
          %v489 = vsub.f32 %v286, %v486
          %v490 = vsub.f32 %v291, %v486
          %v491 = vsub.f32 %v294, %v486
          %v492 = vsub.f32 %v299, %v486
          %v493 = vsub.f32 %v302, %v486
          %v494 = vsub.f32 %v307, %v486
          %v495 = vsub.f32 %v310, %v486
          %v496 = vsub.f32 %v315, %v486
          %v497 = vsub.f32 %v318, %v486
          %v498 = vsub.f32 %v323, %v486
          %v499 = vsub.f32 %v326, %v486
          %v500 = vsub.f32 %v331, %v486
          %v501 = vsub.f32 %v334, %v486
          %v502 = vsub.f32 %v339, %v486
          %v503 = vsub.f32 %v342, %v486
          %v504 = vadd.f32 %v481, 1e-05
          %v505 = vrsqrt.pop %v504
          %v507 = vlaneseq
          %v508 = vshrl.u32 %v507, 7
          %v509 = vsub.s32 0, %v508
          %v510 = vrot.slane %v505, %v509
          %v512 = vmul.f32 %v488, %v510
          %v513 = vmul.f32 %v489, %v510
          %v514 = vmul.f32 %v490, %v510
          %v515 = vmul.f32 %v491, %v510
          %v516 = vmul.f32 %v492, %v510
          %v517 = vmul.f32 %v493, %v510
          %v518 = vmul.f32 %v494, %v510
          %v519 = vmul.f32 %v495, %v510
          %v520 = vmul.f32 %v496, %v510
          %v521 = vmul.f32 %v497, %v510
          %v522 = vmul.f32 %v498, %v510
          %v523 = vmul.f32 %v499, %v510
          %v524 = vmul.f32 %v500, %v510
          %v525 = vmul.f32 %v501, %v510
          %v526 = vmul.f32 %v502, %v510
          %v527 = vmul.f32 %v503, %v510
          %vm528 = vcmask 97280
          %529 = vst.msk [vmem:[#allocation4] sm:$0xff] %vm528, %v512
          %530 = vst.msk [vmem:[#allocation4 + $0x8] sm:$0xff] %vm528, %v513
          %531 = vst.msk [vmem:[#allocation4 + $0x10] sm:$0xff] %vm528, %v514
          %532 = vst.msk [vmem:[#allocation4 + $0x18] sm:$0xff] %vm528, %v515
          %533 = vst.msk [vmem:[#allocation4 + $0x20] sm:$0xff] %vm528, %v516
          %534 = vst.msk [vmem:[#allocation4 + $0x28] sm:$0xff] %vm528, %v517
          %535 = vst.msk [vmem:[#allocation4 + $0x30] sm:$0xff] %vm528, %v518
          %536 = vst.msk [vmem:[#allocation4 + $0x38] sm:$0xff] %vm528, %v519
          %537 = vst.msk [vmem:[#allocation4 + $0x40] sm:$0xff] %vm528, %v520
          %538 = vst.msk [vmem:[#allocation4 + $0x48] sm:$0xff] %vm528, %v521
          %539 = vst.msk [vmem:[#allocation4 + $0x50] sm:$0xff] %vm528, %v522
          %540 = vst.msk [vmem:[#allocation4 + $0x58] sm:$0xff] %vm528, %v523
          %541 = vst.msk [vmem:[#allocation4 + $0x60] sm:$0xff] %vm528, %v524
          %542 = vst.msk [vmem:[#allocation4 + $0x68] sm:$0xff] %vm528, %v525
          %543 = vst.msk [vmem:[#allocation4 + $0x70] sm:$0xff] %vm528, %v526
          %544 = vst.msk [vmem:[#allocation4 + $0x78] sm:$0xff] %vm528, %v527
        $region40: #{conv2d_pallas.1} parent=27 // pred_fallthru
          _
        // Predicated region
        $region41: #{conv2d_pallas.1} parent=27 // pred_check
          %p545 = pneg %p91
        $region42: #{conv2d_pallas.1} parent=27 // pred_check_branch
          %547 = sbr.rel (%p545) target = $region44
        $region43: #{conv2d_pallas.1} parent=27 // pred_region
          %s548 = smul.u32 16, %s19
          %s550 = ssub.s32 2048, 2048
          %551 = vsyncadd [#allocation5], %s550
          %s552 = smul.addr %s548, 128
          %s553 = scalar_lea.hbm %s2, %s552
          %s554 = sshll.u32 [#allocation4], 4
          %s555 = int_to_ptr.vmem [resolvable:$true] %s554
          %560 = dma.vmem_to_hbm [thread:$0]  %s555, 2048, %s553, [#allocation5], 128, 128, 8
        $region44: #{conv2d_pallas.1} parent=27 // pred_fallthru
          _
        // Predicated region
        $region45: #{conv2d_pallas.1} parent=27 // pred_check
          %p561 = pneg %p91
        $region46: #{conv2d_pallas.1} parent=27 // pred_check_branch
          %563 = sbr.rel (%p561) target = $region48
        $region47: #{conv2d_pallas.1} parent=27 // pred_region
          %564 = dma.done [#allocation5], 2048
        $region48: #{conv2d_pallas.1} parent=27 // pred_fallthru
          _
      $region28: #{conv2d_pallas.1} parent=5 // pred_fallthru
        _
      %p565 = scmp.le.s32.totalorder 2, %s9
      // Predicated region
      $region49: #{conv2d_pallas.1} parent=5 // pred_check
        %p566 = pneg %p565
      $region50: #{conv2d_pallas.1} parent=5 // pred_check_branch
        %568 = sbr.rel (%p566) target = $region52
      $region51: #{conv2d_pallas.1} parent=5 // pred_region
        %s569 = ssub.s32 %s9, 2
      $region52: #{conv2d_pallas.1} parent=5 // pred_fallthru
        _
    $region6: #{conv2d_pallas.1} parent=1 // loop_footer
      %s13 = sadd.s32 1, %s9
    $region7: #{conv2d_pallas.1} parent=1 // loop_footer_branch
      %8 = sbr.rel target = $region3
    $region8: #{conv2d_pallas.1} parent=1 // loop_exit
      _
    %570 = vsyncpa [#allocation5], 1
    %s571 = scalar_lea.sflag [#allocation5], 1
    %572 = vsyncpa %s571, 1

</llo_original>
